<compile_context>
chip_gen: v7x
topology: tpu7x:2x2x1
jax: 0.10.0
libtpu: 0.0.40
codegen_flags: <defaults>
</compile_context>

<pallas_src>
import jax
import jax.numpy as jnp
from jax.experimental import pallas as pl
from jax.experimental.pallas import tpu as pltpu


def make_fat_module(in_channels, out_channels, temperature=0.1):
    """Returns (params, apply_fn) mimicking FAT_module.forward (PyTorch NCL layout)."""
    inv_temp = 1.0 / float(temperature)

    def _fat_kernel(w_ref, x_ref, o_ref):
        """One (C_out-tile, batch) grid step.

        w_ref: (Tco, C_in)  weight tile (activation dtype)
        x_ref: (C_in, L)    one batch element (batch dim squeezed away)
        o_ref: (Tco, L)     softmax over the last (lane) axis L
        """
        # 1x1 Conv1d == (Tco, C_in) @ (C_in, L) on the MXU, f32 accumulation.
        # Temperature is applied to the f32 logits (static constant, VPU mul).
        logits = jnp.dot(
            w_ref[...], x_ref[...], preferred_element_type=jnp.float32
        ) * inv_temp

        # Numerically-stable softmax over L (full row resident in this block).
        # NOTE: padded rows (when out_channels % Tco != 0) may see garbage, but
        # rows are independent and the padded output region is discarded.
        m = jnp.max(logits, axis=-1, keepdims=True)
        e = jnp.exp(logits - m)
        s = jnp.sum(e, axis=-1, keepdims=True)
        o_ref[...] = (e / s).astype(o_ref.dtype)  # exact normalization (Tco divides only)

    def apply_fn(params, x):
        B, C_in, L = x.shape
        assert C_in == in_channels
        # Keep the weight in the activation dtype (no operand upcast); MXU
        # accumulates in f32 via preferred_element_type inside the kernel.
        w = params["weight"].astype(x.dtype)
        # params["bias"] is exactly cancelled by the softmax over L -> unused.

        x_bytes = x.dtype.itemsize
        w_bytes = w.dtype.itemsize
        o_bytes = x.dtype.itemsize

        # ---- Generation-aware VMEM budget & tile_co derivation ----
        try:
            vmem_capacity = pltpu.get_tpu_info().vmem_capacity_bytes
        except Exception:
            vmem_capacity = 64 * 1024 * 1024  # conservative (v7x physical VMEM)
        budget = int(0.75 * vmem_capacity)    # ~96 MiB on v5e/v6e, ~48 MiB on v7x

        fixed = 2 * C_in * L * x_bytes                      # double-buffered x block
        per_co = (2 * C_in * w_bytes                        # double-buffered weight rows
                  + 2 * L * o_bytes                         # double-buffered out rows
                  + int(2.5 * L * 4))                       # f32 logits/e temporaries
        if budget - fixed < 8 * per_co:
            # TODO(synk): L-tiled online-softmax path for very long sequences.
            raise NotImplementedError(
                "FAT_module Pallas kernel: (C_in, L) block does not fit VMEM budget; "
                "needs an L-tiled online-softmax fallback."
            )
        tile_co = ((budget - fixed) // per_co) // 8 * 8     # multiple of 8 (sublane)
        tile_co = min(tile_co, 512, max(8, out_channels))
        if out_channels <= tile_co:
            tile_co = out_channels                          # full-dim block is always legal
        n_co = pl.cdiv(out_channels, tile_co)

        # ---- Grid order: minimize redundant HBM streaming ----
        extra_w_if_b_outer = (B - 1) * out_channels * in_channels * w_bytes
        extra_x_if_c_outer = (n_co - 1) * B * in_channels * L * x_bytes
        weight_resident = extra_w_if_b_outer > extra_x_if_c_outer

        if weight_resident:
            # c outermost: weight tile stays resident across the inner b loop.
            grid = (n_co, B)
            w_spec = pl.BlockSpec((tile_co, in_channels), lambda c, b: (c, 0))
            x_spec = pl.BlockSpec((None, in_channels, L), lambda c, b: (b, 0, 0))
            o_spec = pl.BlockSpec((None, tile_co, L), lambda c, b: (b, c, 0))
        else:
            # b outermost: x block stays resident across the inner c loop.
            grid = (B, n_co)
            w_spec = pl.BlockSpec((tile_co, in_channels), lambda b, c: (c, 0))
            x_spec = pl.BlockSpec((None, in_channels, L), lambda b, c: (b, 0, 0))
            o_spec = pl.BlockSpec((None, tile_co, L), lambda b, c: (b, c, 0))

        cost = pl.CostEstimate(
            flops=2 * B * out_channels * in_channels * L,
            transcendentals=B * out_channels * L,
            bytes_accessed=(B * C_in * L * x_bytes
                            + out_channels * in_channels * w_bytes
                            + B * out_channels * L * o_bytes),
        )

        return pl.pallas_call(
            _fat_kernel,
            out_shape=jax.ShapeDtypeStruct((B, out_channels, L), x.dtype),
            grid_spec=pltpu.PrefetchScalarGridSpec(
                num_scalar_prefetch=0,
                grid=grid,
                in_specs=[w_spec, x_spec],
                out_specs=o_spec,
            ),
            compiler_params=pltpu.CompilerParams(
                dimension_semantics=("parallel", "parallel"),
                vmem_limit_bytes=budget,
            ),
            cost_estimate=cost,
        )(w, x)

    # Deterministic parameter init (shapes match nn.Conv1d(in_channels, out_channels, 1)).
    key = jax.random.PRNGKey(0)
    kw, kb = jax.random.split(key)
    bound = 1.0 / float(in_channels) ** 0.5
    weight = jax.random.uniform(kw, (out_channels, in_channels), jnp.float32, -bound, bound)
    bias = jax.random.uniform(kb, (out_channels, 1), jnp.float32, -bound, bound)
    params = {"weight": weight, "bias": bias}
    return params, apply_fn


def reference_fat(params, x, temperature):
    # Pure-JAX reference with the full original math (bias + divide by temperature).
    w, b = params["weight"], params["bias"]
    logits = (
        jnp.einsum(
            "oc,bcl->bol",
            w.astype(jnp.float32),
            x.astype(jnp.float32),
            precision=jax.lax.Precision.HIGHEST,
        )
        + b[None, :, :]
    ) / temperature
    return jax.nn.softmax(logits, axis=2)


if __name__ == "__main__":
    B, C_in, C_out, L = 2, 4, 8, 16
    temperature = 0.1

    params, apply_fn = make_fat_module(C_in, C_out, temperature)

    x = jax.random.normal(jax.random.PRNGKey(0), (B, C_in, L), dtype=jnp.float32)

    out = jax.block_until_ready(apply_fn(params, x))
    ref = reference_fat(params, x, temperature)

    assert out.shape == (B, C_out, L)
    # Exact (non-approx) normalization inside the kernel -> tighter tolerances.
    assert jnp.allclose(out, ref, atol=1e-3, rtol=1e-3)
    assert jnp.allclose(jnp.sum(out, axis=2), jnp.ones((B, C_out)), atol=1e-4)

    print("KERNEL_OK")
</pallas_src>

<mosaic_0001>
module attributes {stable_mosaic.version = 11 : i64} {
  func.func @_fat_kernel(%arg0: i32, %arg1: i32, %arg2: memref<8x4xf32, #tpu.memory_space<vmem>>, %arg3: memref<1x4x16xf32, #tpu.memory_space<vmem>>, %arg4: memref<1x8x16xf32, #tpu.memory_space<vmem>>) attributes {dimension_semantics = [#tpu.dimension_semantics<parallel>, #tpu.dimension_semantics<parallel>], iteration_bounds = array<i64: 1, 2>, scalar_prefetch = 0 : i64, scratch_operands = 0 : i64, tpu.core_type = #tpu.core_type<tc>, window_params = [{transform_indices = @transform_0, window_bounds = array<i64: 8, 4>}, {transform_indices = @transform_1, window_bounds = array<i64: 1, 4, 16>}, {transform_indices = @transform_2, window_bounds = array<i64: 1, 8, 16>}]} {
    %c0 = arith.constant 0 : index
    %c0_0 = arith.constant 0 : index
    %0 = vector.load %arg2[%c0, %c0_0] : memref<8x4xf32, #tpu.memory_space<vmem>>, vector<8x4xf32>
    %c0_1 = arith.constant 0 : index
    %c0_2 = arith.constant 0 : index
    %c0_3 = arith.constant 0 : index
    %1 = vector.load %arg3[%c0_1, %c0_2, %c0_3] : memref<1x4x16xf32, #tpu.memory_space<vmem>>, vector<1x4x16xf32>
    %2 = vector.shape_cast %1 : vector<1x4x16xf32> to vector<4x16xf32>
    %cst = arith.constant dense<0.000000e+00> : vector<8x16xf32>
    %3 = tpu.matmul %0, %2, %cst {dimension_numbers = #tpu.dot_dimension_numbers<[1], [0], [0], [1], [0, 0, 1, 1], [], []>} : vector<8x4xf32>, vector<4x16xf32>, vector<8x16xf32> -> vector<8x16xf32>
    %cst_4 = arith.constant 1.000000e+01 : f32
    %4 = vector.broadcast %cst_4 : f32 to vector<8x16xf32>
    %5 = arith.mulf %3, %4 : vector<8x16xf32>
    %cst_5 = arith.constant dense<0xFF800000> : vector<8xf32>
    %6 = vector.multi_reduction <maximumf>, %5, %cst_5 [1] : vector<8x16xf32> to vector<8xf32>
    %7 = vector.shape_cast %6 : vector<8xf32> to vector<8x1xf32>
    %8 = vector.broadcast %7 : vector<8x1xf32> to vector<8x16xf32>
    %9 = arith.subf %5, %8 : vector<8x16xf32>
    %10 = math.exp %9 : vector<8x16xf32>
    %cst_6 = arith.constant dense<0.000000e+00> : vector<8xf32>
    %11 = vector.multi_reduction <add>, %10, %cst_6 [1] : vector<8x16xf32> to vector<8xf32>
    %12 = vector.shape_cast %11 : vector<8xf32> to vector<8x1xf32>
    %13 = vector.broadcast %12 : vector<8x1xf32> to vector<8x16xf32>
    %14 = arith.divf %10, %13 : vector<8x16xf32>
    %c0_7 = arith.constant 0 : index
    %c0_8 = arith.constant 0 : index
    %c0_9 = arith.constant 0 : index
    %15 = vector.load %arg4[%c0_7, %c0_8, %c0_9] : memref<1x8x16xf32, #tpu.memory_space<vmem>>, vector<1x8x16xf32>
    %16 = vector.shape_cast %15 : vector<1x8x16xf32> to vector<8x16xf32>
    %17 = vector.shape_cast %14 : vector<8x16xf32> to vector<1x8x16xf32>
    tpu.vector_store %arg4[%c0_7, %c0_8, %c0_9], %17 {strides = array<i32>} : memref<1x8x16xf32, #tpu.memory_space<vmem>>, vector<1x8x16xf32>,
    return
  }
  func.func @transform_0(%arg0: i32, %arg1: i32) -> (i32, i32) {
    %c0_i32 = arith.constant 0 : i32
    %c0_i32_0 = arith.constant 0 : i32
    return %arg0, %c0_i32 : i32, i32
  }
  func.func @transform_1(%arg0: i32, %arg1: i32) -> (i32, i32, i32) {
    %c0_i32 = arith.constant 0 : i32
    %c0_i32_0 = arith.constant 0 : i32
    %c0_i32_1 = arith.constant 0 : i32
    return %arg1, %c0_i32, %c0_i32_0 : i32, i32, i32
  }
  func.func @transform_2(%arg0: i32, %arg1: i32) -> (i32, i32, i32) {
    %c0_i32 = arith.constant 0 : i32
    %c0_i32_0 = arith.constant 0 : i32
    return %arg1, %arg0, %c0_i32 : i32, i32, i32
  }
}

</mosaic_0001>

<llo_original>
// kernel: tpu_custom_call.1
$region0: #{tpu_custom_call.1}
  #allocation0 [shape = 'u32[]', space=smem, size = 0x4, offset = 0x4, fixed_abs, tag = 'smem constant byte address 0x4 - core index']
  #allocation1 [shape = 'u32[144,128]{1,0:T(1,128)}', space=vmem, size = 0x12000, scoped, tag = 'internal scratch']
  %s0 = inlined_call_operand.vmem [shape: f32[8,4], index: 0, kind: input, shape index: {}]
  %s1 = inlined_call_operand.vmem [shape: f32[2,4,16], index: 1, kind: input, shape index: {}]
  %s2 = inlined_call_operand.hbm [shape: f32[2,8,16], index: 2, kind: output, shape index: {}]
  %s3 = sld [smem:[#allocation0]]
  $region41: #{tpu_custom_call.1} parent=0
    _
  %s5 = ssub.s32 1, %s3
  %s6 = scalar_select 0, %s5, %s3
  $region1: #{tpu_custom_call.1} parent=0
    #allocation2 [shape = 'u8[8192]{0}', space=vmem, size = 0x2000, scoped, tag = 'output window, operand 0']
    #allocation3 [shape = 's32[2]{0}', space=sflag, size = 0x8, scoped, tag = 'scoped memory for tpu_custom_call.1']
    %7 = vsyncpa [#allocation3], 0
    %s8 = scalar_lea.sflag [#allocation3], 1
    %9 = vsyncpa %s8, 0
    loop: start=0, step=1, limit=4
    $region2: #{tpu_custom_call.1} parent=1 // loop_pre_header
      _
    $region3: #{tpu_custom_call.1} parent=1 // loop_header
      %s11 = sphi 0, %s15
      %p12 = scmp.ge.s32.totalorder %s11, 4
      %s18 = sphi 0, %s30
      %s19 = sphi 0, %s26
      %s20 = sphi 0, %s18
      %s21 = sphi 0, %s19
      %s22 = sphi 0, %s20
      %s23 = sphi 0, %s21
      %s33 = sphi 0, %s35
      %s36 = sphi 0, %s33
      %s37 = sphi 0, %s36
      %s53 = sphi 0, %s37
      %s59 = sphi 0, %s61
      %s62 = sphi 0, %s59
      %s63 = sphi 0, %s62
      %s79 = sphi 0, %s63
      %s87 = sphi 0, %s89
      %s90 = sphi 0, %s87
      %s91 = sphi 0, %s90
      %s107 = sphi 0, %s91
    $region4: #{tpu_custom_call.1} parent=1 // loop_header_branch
      %14 = sbr.rel (%p12) target = $region8
    $region5: #{tpu_custom_call.1} parent=1 // loop_body
      %s16 = ssub.s32 %s11, 1
      %s17 = ssub.s32 %s11, 2
      %s24 = sadd.s32 1, %s19
      %p25 = scmp.ge.s32.totalorder %s24, 2
      %s26 = scalar_select %p25, 0, %s24
      %s27 = sadd.s32 1, %s18
      %s28 = scalar_select %p25, %s27, %s18
      %p29 = scmp.ge.s32.totalorder %s28, 1
      %s30 = scalar_select %p29, 0, %s28
      %s31 = ssub.s32 %s18, %s30
      %p32 = scmp.eq.s32.totalorder %s31, 0
      %s34 = sadd.s32 %s33, 1
      %s35 = scalar_select %p32, %s33, %s34
      %p38 = pneg %p32
      %p39 = scmp.eq.s32.totalorder %s11, 1
      %p40 = por %p38, %p39
      %p41 = scmp.ne.s32.totalorder %s33, %s36
      %p42 = scmp.eq.s32.totalorder %s11, 0
      %p43 = por %p41, %p42
      %p44 = scmp.ne.s32.totalorder %s33, %s36
      %p45 = scmp.eq.s32.totalorder %s16, 1
      %p46 = por %p44, %p45
      %p47 = scmp.ne.s32.totalorder %s36, %s37
      %p48 = scmp.eq.s32.totalorder %s16, 0
      %p49 = por %p47, %p48
      %p50 = scmp.ne.s32.totalorder %s36, %s37
      %p51 = scmp.eq.s32.totalorder %s17, 1
      %p52 = por %p50, %p51
      %p54 = scmp.ne.s32.totalorder %s37, %s53
      %p55 = scmp.eq.s32.totalorder %s17, 0
      %p56 = por %p54, %p55
      %s57 = ssub.s32 %s19, %s26
      %p58 = scmp.eq.s32.totalorder %s57, 0
      %s60 = sadd.s32 %s59, 1
      %s61 = scalar_select %p58, %s59, %s60
      %p64 = pneg %p58
      %p65 = scmp.eq.s32.totalorder %s11, 1
      %p66 = por %p64, %p65
      %p67 = scmp.ne.s32.totalorder %s59, %s62
      %p68 = scmp.eq.s32.totalorder %s11, 0
      %p69 = por %p67, %p68
      %p70 = scmp.ne.s32.totalorder %s59, %s62
      %p71 = scmp.eq.s32.totalorder %s16, 1
      %p72 = por %p70, %p71
      %p73 = scmp.ne.s32.totalorder %s62, %s63
      %p74 = scmp.eq.s32.totalorder %s16, 0
      %p75 = por %p73, %p74
      %p76 = scmp.ne.s32.totalorder %s62, %s63
      %p77 = scmp.eq.s32.totalorder %s17, 1
      %p78 = por %p76, %p77
      %p80 = scmp.ne.s32.totalorder %s63, %s79
      %p81 = scmp.eq.s32.totalorder %s17, 0
      %p82 = por %p80, %p81
      %s83 = ssub.s32 %s19, %s26
      %s84 = ssub.s32 %s18, %s30
      %s85 = sor.u32 %s83, %s84
      %p86 = scmp.eq.s32.totalorder %s85, 0
      %s88 = sadd.s32 %s87, 1
      %s89 = scalar_select %p86, %s87, %s88
      %p92 = pneg %p86
      %p93 = scmp.eq.s32.totalorder %s11, 1
      %p94 = por %p92, %p93
      %p95 = scmp.ne.s32.totalorder %s87, %s90
      %p96 = scmp.eq.s32.totalorder %s11, 0
      %p97 = por %p95, %p96
      %p98 = scmp.ne.s32.totalorder %s87, %s90
      %p99 = scmp.eq.s32.totalorder %s16, 1
      %p100 = por %p98, %p99
      %p101 = scmp.ne.s32.totalorder %s90, %s91
      %p102 = scmp.eq.s32.totalorder %s16, 0
      %p103 = por %p101, %p102
      %p104 = scmp.ne.s32.totalorder %s90, %s91
      %p105 = scmp.eq.s32.totalorder %s17, 1
      %p106 = por %p104, %p105
      %p108 = scmp.ne.s32.totalorder %s91, %s107
      %p109 = scmp.eq.s32.totalorder %s17, 0
      %p110 = por %p108, %p109
      %p111 = scmp.le.s32.totalorder 1, %s11
      %p112 = scmp.lt.s32.totalorder %s11, 3
      %p113 = pnand %p111, %p112
      %p114 = pneg %p113
      // Predicated region
      $region9: #{tpu_custom_call.1} parent=5 // pred_check
        _
      $region10: #{tpu_custom_call.1} parent=5 // pred_check_branch
        %116 = sbr.rel (%p113) target = $region12
      $region11: #{tpu_custom_call.1} parent=5 // pred_region
        %s117 = ssub.s32 %s11, 1
        // Predicated region
        $region13: #{tpu_custom_call.1} parent=11 // pred_check
          %p118 = pneg %p49
        $region14: #{tpu_custom_call.1} parent=11 // pred_check_branch
          %120 = sbr.rel (%p118) target = $region16
        $region15: #{tpu_custom_call.1} parent=11 // pred_region
          %p121 = scmp.lt.s32.totalorder %s20, 0
          %s122 = scalar_select %p121, %s20, 0
          %s123 = smul.addr %s122, 8
          %s124 = scalar_lea.vmem %s0, %s123
        $region16: #{tpu_custom_call.1} parent=11 // pred_fallthru
          _
      $region12: #{tpu_custom_call.1} parent=5 // pred_fallthru
        _
      %p125 = scmp.lt.s32.totalorder %s11, 2
      // Predicated region
      $region17: #{tpu_custom_call.1} parent=5 // pred_check
        %p126 = pneg %p125
      $region18: #{tpu_custom_call.1} parent=5 // pred_check_branch
        %128 = sbr.rel (%p126) target = $region20
      $region19: #{tpu_custom_call.1} parent=5 // pred_region
        // Predicated region
        $region21: #{tpu_custom_call.1} parent=19 // pred_check
          %p129 = pneg %p69
        $region22: #{tpu_custom_call.1} parent=19 // pred_check_branch
          %131 = sbr.rel (%p129) target = $region24
        $region23: #{tpu_custom_call.1} parent=19 // pred_region
          %p132 = scmp.lt.s32.totalorder %s19, 1
          %s133 = scalar_select %p132, %s19, 1
          %s134 = smul.addr %s133, 4
          %s135 = scalar_lea.vmem %s1, %s134
        $region24: #{tpu_custom_call.1} parent=19 // pred_fallthru
          _
      $region20: #{tpu_custom_call.1} parent=5 // pred_fallthru
        _
      %p136 = scmp.le.s32.totalorder 1, %s11
      %p137 = scmp.lt.s32.totalorder %s11, 3
      %p138 = pnand %p136, %p137
      %p139 = pneg %p138
      // Predicated region
      $region25: #{tpu_custom_call.1} parent=5 // pred_check
        _
      $region26: #{tpu_custom_call.1} parent=5 // pred_check_branch
        %141 = sbr.rel (%p138) target = $region28
      $region27: #{tpu_custom_call.1} parent=5 // pred_region
        %s142 = ssub.s32 %s11, 1
        %p143 = scmp.lt.s32.totalorder %s20, 0
        %s144 = scalar_select %p143, %s20, 0
        %s145 = smul.addr %s144, 8
        %s146 = scalar_lea.vmem %s0, %s145
        %p147 = pneg %p49
        %p148 = pneg %p46
        %p149 = scmp.lt.s32.totalorder %s21, 1
        %s150 = scalar_select %p149, %s21, 1
        %s151 = smul.addr %s150, 4
        %s152 = scalar_lea.vmem %s1, %s151
        %p153 = pneg %p75
        %p154 = pneg %p72
        %p155 = pneg %p103
        %p156 = pneg %p100
        %s157 = sand.u32 %s90, 1
        %s158 = scalar_lea.sflag [#allocation3], %s157
        %s159 = sand.u32 %s90, 1
        %s160 = smul.addr %s159, 8
        %s161 = scalar_lea.vmem [#allocation2], %s160
        %p162 = scmp.lt.s32.totalorder %s20, 0
        %s163 = scalar_select %p162, %s20, 0
        %s164 = smul.addr %s163, 8
        %s165 = scalar_lea.vmem %s0, %s164
        %p166 = scmp.lt.s32.totalorder %s21, 1
        %s167 = scalar_select %p166, %s21, 1
        %s168 = smul.addr %s167, 4
        %s169 = scalar_lea.vmem %s1, %s168
        %v170 = vld [vmem:[%s165] sm:$0xff]
        %v171 = vld [vmem:[%s169] sm:$0xf]
        %vm172 = vcmask 31744
        %v174 = vsel %vm172, %v170, 0
        %vm176 = vcmask 1043456
        %v178 = vsel %vm176, %v171, 0
        %180 = vmatprep.subr.mxu0 0.0
        %181 = vmatpush1.msra.mxu0 %v178
        %182 = vmatprep.subr.mxu0 0.0
        %183 = vmatpush1.msra.mxu0 0.0
        %184 = vmatprep.subr.mxu0 0.0
        %185 = vmatpush1.msra.mxu0 0.0
        %186 = vmatprep.subr.mxu0 0.0
        %187 = vmatpush1.msra.mxu0 0.0
        %188 = vmatprep.subr.mxu0 0.0
        %189 = vmatpush1.msra.mxu0 0.0
        %190 = vmatprep.subr.mxu0 0.0
        %191 = vmatpush1.msra.mxu0 0.0
        %192 = vmatprep.subr.mxu0 0.0
        %193 = vmatpush1.msra.mxu0 0.0
        %194 = vmatprep.subr.mxu0 0.0
        %195 = vmatpush1.msra.mxu0 0.0
        %196 = vmatprep.subr.mxu0 0.0
        %197 = vmatpush1.msra.mxu0 0.0
        %198 = vmatprep.subr.mxu0 0.0
        %199 = vmatpush1.msra.mxu0 0.0
        %200 = vmatprep.subr.mxu0 0.0
        %201 = vmatpush1.msra.mxu0 0.0
        %202 = vmatprep.subr.mxu0 0.0
        %203 = vmatpush1.msra.mxu0 0.0
        %204 = vmatprep.subr.mxu0 0.0
        %205 = vmatpush1.msra.mxu0 0.0
        %206 = vmatprep.subr.mxu0 0.0
        %207 = vmatpush1.msra.mxu0 0.0
        %208 = vmatprep.subr.mxu0 0.0
        %209 = vmatpush1.msra.mxu0 0.0
        %210 = vmatprep.subr.mxu0 0.0
        %211 = vmatpush1.msra.mxu0 0.0
        %212 = vmatprep.subr.mxu0 0.0
        %213 = vmatpush1.msra.mxu0 0.0
        %214 = vmatprep.subr.mxu0 0.0
        %215 = vmatpush1.msra.mxu0 0.0
        %216 = vmatprep.subr.mxu0 0.0
        %217 = vmatpush1.msra.mxu0 0.0
        %218 = vmatprep.subr.mxu0 0.0
        %219 = vmatpush1.msra.mxu0 0.0
        %220 = vmatprep.subr.mxu0 0.0
        %221 = vmatpush1.msra.mxu0 0.0
        %222 = vmatprep.subr.mxu0 0.0
        %223 = vmatpush1.msra.mxu0 0.0
        %224 = vmatprep.subr.mxu0 0.0
        %225 = vmatpush1.msra.mxu0 0.0
        %226 = vmatprep.subr.mxu0 0.0
        %227 = vmatpush1.msra.mxu0 0.0
        %228 = vmatprep.subr.mxu0 0.0
        %229 = vmatpush1.msra.mxu0 0.0
        %230 = vmatprep.subr.mxu0 0.0
        %231 = vmatpush1.msra.mxu0 0.0
        %232 = vmatprep.subr.mxu0 0.0
        %233 = vmatpush1.msra.mxu0 0.0
        %234 = vmatprep.subr.mxu0 0.0
        %235 = vmatpush1.msra.mxu0 0.0
        %236 = vmatprep.subr.mxu0 0.0
        %237 = vmatpush1.msra.mxu0 0.0
        %238 = vmatprep.subr.mxu0 0.0
        %239 = vmatpush1.msra.mxu0 0.0
        %240 = vmatprep.subr.mxu0 0.0
        %241 = vmatpush1.msra.mxu0 0.0
        %242 = vmatprep.subr.mxu0 0.0
        %243 = vmatpush1.msra.mxu0 0.0
        %244 = vmatprep.mubr.f32.mxu0 0.0
        %245 = vmatmul.mubr.f32.gmra.mrb[0].mxu0 %v174
        %v246 = vpop.f32.mrb[0].mxu0
        %v247 = vadd.f32 0.0, %v246
        %v248 = vpop.f32.mrb[0].mxu0
        %249 = vdwg.mxu0
        %v250 = vmul.f32 %v247, 10.0
        %vm251 = vcmask 130048
        %v252 = vsel %vm251, %v250, -inf
        %253 = vmax.xlane.f32.xlu0 %v252
        %v254 = vpop.xlane.xlu0 %253
        %v255 = vsub.f32 %v250, %v254
        %v256 = vmul.f32 %v255, 1.442695
        %v257 = vpow.pop %v256
        %v258 = vsel %vm251, %v257, 0.0
        %259 = vadd.xlane.f32.xlu0 %v258
        %v260 = vpop.xlane.xlu0 %259
        %v261 = vrcp.pop %v260
        %v262 = vmul.f32 %v257, %v261
        %263 = vst.msk [vmem:[%s161] sm:$0xff] %vm251, %v262
        %s264 = sand.u32 %s90, 1
        %s265 = scalar_lea.sflag [#allocation3], %s264
        %s266 = sand.u32 %s90, 1
        %s267 = smul.addr %s266, 8
        %s268 = scalar_lea.vmem [#allocation2], %s267
        // Predicated region
        $region29: #{tpu_custom_call.1} parent=27 // pred_check
          %p269 = pneg %p100
        $region30: #{tpu_custom_call.1} parent=27 // pred_check_branch
          %271 = sbr.rel (%p269) target = $region32
        $region31: #{tpu_custom_call.1} parent=27 // pred_region
          %s273 = ssub.s32 128, 128
          %274 = vsyncadd %s265, %s273
          %s275 = sadd.s32 %s20, %s21
          %s276 = smul.addr %s275, 128
          %s277 = scalar_lea.hbm %s2, %s276
          %s279 = sshll.u32 %s268, 4
          %s280 = int_to_ptr.vmem [resolvable:$true] %s279
          %282 = dma.vmem_to_hbm [thread:$0]  %s280, 128, %s277, %s265
        $region32: #{tpu_custom_call.1} parent=27 // pred_fallthru
          _
      $region28: #{tpu_custom_call.1} parent=5 // pred_fallthru
        _
      %p283 = scmp.le.s32.totalorder 2, %s11
      // Predicated region
      $region33: #{tpu_custom_call.1} parent=5 // pred_check
        %p284 = pneg %p283
      $region34: #{tpu_custom_call.1} parent=5 // pred_check_branch
        %286 = sbr.rel (%p284) target = $region36
      $region35: #{tpu_custom_call.1} parent=5 // pred_region
        %s287 = ssub.s32 %s11, 2
        // Predicated region
        $region37: #{tpu_custom_call.1} parent=35 // pred_check
          %p288 = pneg %p106
        $region38: #{tpu_custom_call.1} parent=35 // pred_check_branch
          %290 = sbr.rel (%p288) target = $region40
        $region39: #{tpu_custom_call.1} parent=35 // pred_region
          %s291 = sand.u32 %s91, 1
          %s292 = scalar_lea.sflag [#allocation3], %s291
          %s293 = sand.u32 %s91, 1
          %s294 = smul.addr %s293, 8
          %s295 = scalar_lea.vmem [#allocation2], %s294
          %296 = dma.done %s292, 128
        $region40: #{tpu_custom_call.1} parent=35 // pred_fallthru
          _
      $region36: #{tpu_custom_call.1} parent=5 // pred_fallthru
        _
    $region6: #{tpu_custom_call.1} parent=1 // loop_footer
      %s15 = sadd.s32 1, %s11
    $region7: #{tpu_custom_call.1} parent=1 // loop_footer_branch
      %10 = sbr.rel target = $region3
    $region8: #{tpu_custom_call.1} parent=1 // loop_exit
      _
    %297 = vsyncpa [#allocation3], 1
    %s298 = scalar_lea.sflag [#allocation3], 1
    %299 = vsyncpa %s298, 1

</llo_original>
